<compile_context>
chip_gen: v5e
topology: v5e:2x2
jax: 0.10.0
libtpu: 0.0.40
codegen_flags: <defaults>
</compile_context>

<pallas_src>
import math

import jax
import jax.numpy as jnp
import numpy as np
from jax.experimental import pallas as pl
from jax.experimental.pallas import tpu as pltpu


def hetgc_kernel(a00_ref, a0110_ref, a01_ref, bd1_ref, bd2_ref, bd3_ref,
                 x0_ref, x1_ref, x00_ref, out_ref):
    a00 = a00_ref[...]        # (N0, N0)
    a0110 = a0110_ref[...]    # (N0, N0)          precomputed A01 @ A10
    a01 = a01_ref[...]        # (N0, N1)
    bd1 = bd1_ref[...]        # (T*Cin, T*Cout)   block-diag theta1
    bd2 = bd2_ref[...]        # (T*Cin, T*Cout)   block-diag theta2
    bd3 = bd3_ref[...]        # (T*Cin, T*Cout)   block-diag theta3
    x0 = x0_ref[0]            # (N0, T*Cin)   current batch, all time steps
    x1 = x1_ref[0]            # (N1, T*Cin)
    x00 = x00_ref[0]          # (N0, T*Cout)

    # node aggregation over the whole (T, Cin) slab at once (wide MXU contraction)
    agg1 = jnp.dot(a00, x0, preferred_element_type=jnp.float32)     # (N0, T*Cin)
    agg2 = jnp.dot(a0110, x0, preferred_element_type=jnp.float32)   # (N0, T*Cin)
    agg3 = jnp.dot(a01, x1, preferred_element_type=jnp.float32)     # (N0, T*Cin)

    # channel mixing: block-diagonal thetas act per-time-slice on the merged lane axis
    u1 = jax.nn.relu(jnp.dot(agg1, bd1, preferred_element_type=jnp.float32))   # (N0, T*Cout)
    u2_pre = (jnp.dot(agg2, bd2, preferred_element_type=jnp.float32)
              + jnp.dot(agg3, bd3, preferred_element_type=jnp.float32))
    u2 = jax.nn.sigmoid(u2_pre)                                                 # (N0, T*Cout)

    u = jax.nn.relu((u1 + u2) * 0.5)
    out = jax.nn.relu((1.0 - 0.1) * u + 0.1 * x00)
    out_ref[0] = out.astype(out_ref.dtype)


def het_graph_convolution(A00, A01, A10, theta1, theta2, theta3, X0l, X1l, X00):
    """Inputs in PyTorch layout: X0l (B,N0,T,Cin), X1l (B,N1,T,Cin), X00 (B,N0,T,Cout)."""
    B, N0, T, Cin = X0l.shape
    N1 = X1l.shape[1]
    Cout = theta1.shape[1]

    # --- grid-invariant precomputation (hoisted out of the kernel, done once) ---
    A0110 = A01 @ A10                          # (N0, N0)
    eye_t = jnp.eye(T, dtype=theta1.dtype)
    bd1 = jnp.kron(eye_t, theta1)              # (T*Cin, T*Cout)
    bd2 = jnp.kron(eye_t, theta2)              # (T*Cin, T*Cout)
    bd3 = jnp.kron(eye_t, theta3)              # (T*Cin, T*Cout)

    # --- free, contiguous reshapes (no transposes / HBM round-trips) ---
    x0 = X0l.reshape(B, N0, T * Cin)           # 128 lanes
    x1 = X1l.reshape(B, N1, T * Cin)           # 128 lanes
    x00 = X00.reshape(B, N0, T * Cout)         # 256 lanes (lane-dense output path)

    const2d = lambda b: (0, 0)
    per_b = lambda b: (b, 0, 0)

    out_flat = pl.pallas_call(
        hetgc_kernel,
        out_shape=jax.ShapeDtypeStruct((B, N0, T * Cout), jnp.float32),
        grid_spec=pltpu.PrefetchScalarGridSpec(
            num_scalar_prefetch=0,
            grid=(B,),
            in_specs=[
                pl.BlockSpec((N0, N0), const2d),                    # A00
                pl.BlockSpec((N0, N0), const2d),                    # A01 @ A10
                pl.BlockSpec((N0, N1), const2d),                    # A01
                pl.BlockSpec((T * Cin, T * Cout), const2d),         # blockdiag(theta1)
                pl.BlockSpec((T * Cin, T * Cout), const2d),         # blockdiag(theta2)
                pl.BlockSpec((T * Cin, T * Cout), const2d),         # blockdiag(theta3)
                pl.BlockSpec((1, N0, T * Cin), per_b),              # X0l (merged T,Cin)
                pl.BlockSpec((1, N1, T * Cin), per_b),              # X1l
                pl.BlockSpec((1, N0, T * Cout), per_b),             # X00
            ],
            out_specs=pl.BlockSpec((1, N0, T * Cout), per_b),
        ),
        compiler_params=pltpu.CompilerParams(
            dimension_semantics=("parallel",)),
    )(A00, A0110, A01, bd1, bd2, bd3, x0, x1, x00)

    # back to PyTorch layout (B, N0, T, Cout) — contiguous split, free
    return out_flat.reshape(B, N0, T, Cout)


def ref_forward(A00, A01, A10, th1, th2, th3, X0l, X1l, X00):
    """Plain-JAX reference mirroring the PyTorch forward exactly."""
    u1 = jnp.einsum('ij,bjtc->bitc', A00, X0l)
    u1 = jax.nn.relu(jnp.einsum('bitc,cd->bitd', u1, th1))
    u2 = jnp.einsum('ij,bjtc->bitc', A01 @ A10, X0l)
    u3 = jnp.einsum('ij,bjtc->bitc', A01, X1l)
    u2 = jax.nn.sigmoid(jnp.einsum('bitc,cd->bitd', u2, th2)
                        + jnp.einsum('bitc,cd->bitd', u3, th3))
    u1 = jax.nn.relu((u1 + u2) / 2)
    return jax.nn.relu((1 - 0.1) * u1 + 0.1 * X00)


if __name__ == "__main__":
    B, T = 2, 8
    N0, N1 = 16, 8            # heterogeneous node counts
    Cin, Cout = 16, 32

    key = jax.random.PRNGKey(0)
    ks = jax.random.split(key, 9)

    # adjacency-like matrices (constructor args of the module)
    A00 = jax.random.uniform(ks[0], (N0, N0), jnp.float32) / N0
    A01 = jax.random.uniform(ks[1], (N0, N1), jnp.float32) / N1
    A10 = jax.random.uniform(ks[2], (N1, N0), jnp.float32) / N0

    # theta init matches reset_parameters(): uniform(-stdv, stdv), stdv = 1/sqrt(out_channels)
    stdv = 1.0 / math.sqrt(Cout)
    theta1 = jax.random.uniform(ks[3], (Cin, Cout), jnp.float32, -stdv, stdv)
    theta2 = jax.random.uniform(ks[4], (Cin, Cout), jnp.float32, -stdv, stdv)
    theta3 = jax.random.uniform(ks[5], (Cin, Cout), jnp.float32, -stdv, stdv)

    # forward inputs (PyTorch layout: (batch, node, time, channel))
    X0l = jax.random.normal(ks[6], (B, N0, T, Cin), jnp.float32)
    X1l = jax.random.normal(ks[7], (B, N1, T, Cin), jnp.float32)
    X00 = jax.random.normal(ks[8], (B, N0, T, Cout), jnp.float32)

    out = het_graph_convolution(A00, A01, A10, theta1, theta2, theta3, X0l, X1l, X00)
    out = jax.block_until_ready(out)

    ref = ref_forward(A00, A01, A10, theta1, theta2, theta3, X0l, X1l, X00)
    assert out.shape == (B, N0, T, Cout)
    np.testing.assert_allclose(np.asarray(out), np.asarray(ref), rtol=1e-5, atol=1e-5)

    print("KERNEL_OK")
</pallas_src>

<mosaic_0001>
module attributes {stable_mosaic.version = 11 : i64} {
  func.func @hetgc_kernel(%arg0: i32, %arg1: memref<16x16xf32, #tpu.memory_space<vmem>>, %arg2: memref<16x16xf32, #tpu.memory_space<vmem>>, %arg3: memref<16x8xf32, #tpu.memory_space<vmem>>, %arg4: memref<128x256xf32, #tpu.memory_space<vmem>>, %arg5: memref<128x256xf32, #tpu.memory_space<vmem>>, %arg6: memref<128x256xf32, #tpu.memory_space<vmem>>, %arg7: memref<1x16x128xf32, #tpu.memory_space<vmem>>, %arg8: memref<1x8x128xf32, #tpu.memory_space<vmem>>, %arg9: memref<1x16x256xf32, #tpu.memory_space<vmem>>, %arg10: memref<1x16x256xf32, #tpu.memory_space<vmem>>) attributes {dimension_semantics = [#tpu.dimension_semantics<parallel>], iteration_bounds = array<i64: 2>, scalar_prefetch = 0 : i64, scratch_operands = 0 : i64, tpu.core_type = #tpu.core_type<tc>, window_params = [{pipeline_mode = #tpu.pipeline_mode<synchronous>, transform_indices = @transform_0, window_bounds = array<i64: 16, 16>}, {pipeline_mode = #tpu.pipeline_mode<synchronous>, transform_indices = @transform_1, window_bounds = array<i64: 16, 16>}, {pipeline_mode = #tpu.pipeline_mode<synchronous>, transform_indices = @transform_2, window_bounds = array<i64: 16, 8>}, {pipeline_mode = #tpu.pipeline_mode<synchronous>, transform_indices = @transform_3, window_bounds = array<i64: 128, 256>}, {pipeline_mode = #tpu.pipeline_mode<synchronous>, transform_indices = @transform_4, window_bounds = array<i64: 128, 256>}, {pipeline_mode = #tpu.pipeline_mode<synchronous>, transform_indices = @transform_5, window_bounds = array<i64: 128, 256>}, {transform_indices = @transform_6, window_bounds = array<i64: 1, 16, 128>}, {transform_indices = @transform_7, window_bounds = array<i64: 1, 8, 128>}, {transform_indices = @transform_8, window_bounds = array<i64: 1, 16, 256>}, {transform_indices = @transform_9, window_bounds = array<i64: 1, 16, 256>}]} {
    %c0 = arith.constant 0 : index
    %c0_0 = arith.constant 0 : index
    %0 = vector.load %arg1[%c0, %c0_0] : memref<16x16xf32, #tpu.memory_space<vmem>>, vector<16x16xf32>
    %c0_1 = arith.constant 0 : index
    %c0_2 = arith.constant 0 : index
    %1 = vector.load %arg2[%c0_1, %c0_2] : memref<16x16xf32, #tpu.memory_space<vmem>>, vector<16x16xf32>
    %c0_3 = arith.constant 0 : index
    %c0_4 = arith.constant 0 : index
    %2 = vector.load %arg3[%c0_3, %c0_4] : memref<16x8xf32, #tpu.memory_space<vmem>>, vector<16x8xf32>
    %c0_5 = arith.constant 0 : index
    %c0_6 = arith.constant 0 : index
    %3 = vector.load %arg4[%c0_5, %c0_6] : memref<128x256xf32, #tpu.memory_space<vmem>>, vector<128x256xf32>
    %c0_7 = arith.constant 0 : index
    %c0_8 = arith.constant 0 : index
    %4 = vector.load %arg5[%c0_7, %c0_8] : memref<128x256xf32, #tpu.memory_space<vmem>>, vector<128x256xf32>
    %c0_9 = arith.constant 0 : index
    %c0_10 = arith.constant 0 : index
    %5 = vector.load %arg6[%c0_9, %c0_10] : memref<128x256xf32, #tpu.memory_space<vmem>>, vector<128x256xf32>
    %c0_11 = arith.constant 0 : index
    %c0_12 = arith.constant 0 : index
    %c0_13 = arith.constant 0 : index
    %6 = vector.load %arg7[%c0_11, %c0_12, %c0_13] : memref<1x16x128xf32, #tpu.memory_space<vmem>>, vector<1x16x128xf32>
    %7 = vector.shape_cast %6 : vector<1x16x128xf32> to vector<16x128xf32>
    %c0_14 = arith.constant 0 : index
    %c0_15 = arith.constant 0 : index
    %c0_16 = arith.constant 0 : index
    %8 = vector.load %arg8[%c0_14, %c0_15, %c0_16] : memref<1x8x128xf32, #tpu.memory_space<vmem>>, vector<1x8x128xf32>
    %9 = vector.shape_cast %8 : vector<1x8x128xf32> to vector<8x128xf32>
    %c0_17 = arith.constant 0 : index
    %c0_18 = arith.constant 0 : index
    %c0_19 = arith.constant 0 : index
    %10 = vector.load %arg9[%c0_17, %c0_18, %c0_19] : memref<1x16x256xf32, #tpu.memory_space<vmem>>, vector<1x16x256xf32>
    %11 = vector.shape_cast %10 : vector<1x16x256xf32> to vector<16x256xf32>
    %cst = arith.constant dense<0.000000e+00> : vector<16x128xf32>
    %12 = tpu.matmul %0, %7, %cst {dimension_numbers = #tpu.dot_dimension_numbers<[1], [0], [0], [1], [0, 0, 1, 1], [], []>} : vector<16x16xf32>, vector<16x128xf32>, vector<16x128xf32> -> vector<16x128xf32>
    %cst_20 = arith.constant dense<0.000000e+00> : vector<16x128xf32>
    %13 = tpu.matmul %1, %7, %cst_20 {dimension_numbers = #tpu.dot_dimension_numbers<[1], [0], [0], [1], [0, 0, 1, 1], [], []>} : vector<16x16xf32>, vector<16x128xf32>, vector<16x128xf32> -> vector<16x128xf32>
    %cst_21 = arith.constant dense<0.000000e+00> : vector<16x128xf32>
    %14 = tpu.matmul %2, %9, %cst_21 {dimension_numbers = #tpu.dot_dimension_numbers<[1], [0], [0], [1], [0, 0, 1, 1], [], []>} : vector<16x8xf32>, vector<8x128xf32>, vector<16x128xf32> -> vector<16x128xf32>
    %cst_22 = arith.constant dense<0.000000e+00> : vector<16x256xf32>
    %15 = tpu.matmul %12, %3, %cst_22 {dimension_numbers = #tpu.dot_dimension_numbers<[1], [0], [0], [1], [0, 0, 1, 1], [], []>} : vector<16x128xf32>, vector<128x256xf32>, vector<16x256xf32> -> vector<16x256xf32>
    %cst_23 = arith.constant 0.000000e+00 : f32
    %16 = vector.broadcast %cst_23 : f32 to vector<16x256xf32>
    %17 = arith.maximumf %15, %16 : vector<16x256xf32>
    %cst_24 = arith.constant dense<0.000000e+00> : vector<16x256xf32>
    %18 = tpu.matmul %13, %4, %cst_24 {dimension_numbers = #tpu.dot_dimension_numbers<[1], [0], [0], [1], [0, 0, 1, 1], [], []>} : vector<16x128xf32>, vector<128x256xf32>, vector<16x256xf32> -> vector<16x256xf32>
    %cst_25 = arith.constant dense<0.000000e+00> : vector<16x256xf32>
    %19 = tpu.matmul %14, %5, %cst_25 {dimension_numbers = #tpu.dot_dimension_numbers<[1], [0], [0], [1], [0, 0, 1, 1], [], []>} : vector<16x128xf32>, vector<128x256xf32>, vector<16x256xf32> -> vector<16x256xf32>
    %20 = arith.addf %18, %19 : vector<16x256xf32>
    %21 = arith.negf %20 : vector<16x256xf32>
    %22 = math.exp %21 : vector<16x256xf32>
    %cst_26 = arith.constant 1.000000e+00 : f32
    %23 = vector.broadcast %cst_26 : f32 to vector<16x256xf32>
    %24 = arith.addf %23, %22 : vector<16x256xf32>
    %25 = arith.divf %23, %24 : vector<16x256xf32>
    %26 = arith.addf %17, %25 : vector<16x256xf32>
    %cst_27 = arith.constant 5.000000e-01 : f32
    %27 = vector.broadcast %cst_27 : f32 to vector<16x256xf32>
    %28 = arith.mulf %26, %27 : vector<16x256xf32>
    %cst_28 = arith.constant 0.000000e+00 : f32
    %29 = vector.broadcast %cst_28 : f32 to vector<16x256xf32>
    %30 = arith.maximumf %28, %29 : vector<16x256xf32>
    %cst_29 = arith.constant 0.899999976 : f32
    %31 = vector.broadcast %cst_29 : f32 to vector<16x256xf32>
    %32 = arith.mulf %31, %30 : vector<16x256xf32>
    %cst_30 = arith.constant 1.000000e-01 : f32
    %33 = vector.broadcast %cst_30 : f32 to vector<16x256xf32>
    %34 = arith.mulf %33, %11 : vector<16x256xf32>
    %35 = arith.addf %32, %34 : vector<16x256xf32>
    %cst_31 = arith.constant 0.000000e+00 : f32
    %36 = vector.broadcast %cst_31 : f32 to vector<16x256xf32>
    %37 = arith.maximumf %35, %36 : vector<16x256xf32>
    %c0_32 = arith.constant 0 : index
    %c0_33 = arith.constant 0 : index
    %c0_34 = arith.constant 0 : index
    %38 = vector.load %arg10[%c0_32, %c0_33, %c0_34] : memref<1x16x256xf32, #tpu.memory_space<vmem>>, vector<1x16x256xf32>
    %39 = vector.shape_cast %38 : vector<1x16x256xf32> to vector<16x256xf32>
    %40 = vector.shape_cast %37 : vector<16x256xf32> to vector<1x16x256xf32>
    tpu.vector_store %arg10[%c0_32, %c0_33, %c0_34], %40 {strides = array<i32>} : memref<1x16x256xf32, #tpu.memory_space<vmem>>, vector<1x16x256xf32>,
    return
  }
  func.func @transform_0(%arg0: i32) -> (i32, i32) {
    %c0_i32 = arith.constant 0 : i32
    %c0_i32_0 = arith.constant 0 : i32
    %c0_i32_1 = arith.constant 0 : i32
    return %c0_i32, %c0_i32_0 : i32, i32
  }
  func.func @transform_1(%arg0: i32) -> (i32, i32) {
    %c0_i32 = arith.constant 0 : i32
    %c0_i32_0 = arith.constant 0 : i32
    %c0_i32_1 = arith.constant 0 : i32
    return %c0_i32, %c0_i32_0 : i32, i32
  }
  func.func @transform_2(%arg0: i32) -> (i32, i32) {
    %c0_i32 = arith.constant 0 : i32
    %c0_i32_0 = arith.constant 0 : i32
    %c0_i32_1 = arith.constant 0 : i32
    return %c0_i32, %c0_i32_0 : i32, i32
  }
  func.func @transform_3(%arg0: i32) -> (i32, i32) {
    %c0_i32 = arith.constant 0 : i32
    %c0_i32_0 = arith.constant 0 : i32
    %c0_i32_1 = arith.constant 0 : i32
    return %c0_i32, %c0_i32_0 : i32, i32
  }
  func.func @transform_4(%arg0: i32) -> (i32, i32) {
    %c0_i32 = arith.constant 0 : i32
    %c0_i32_0 = arith.constant 0 : i32
    %c0_i32_1 = arith.constant 0 : i32
    return %c0_i32, %c0_i32_0 : i32, i32
  }
  func.func @transform_5(%arg0: i32) -> (i32, i32) {
    %c0_i32 = arith.constant 0 : i32
    %c0_i32_0 = arith.constant 0 : i32
    %c0_i32_1 = arith.constant 0 : i32
    return %c0_i32, %c0_i32_0 : i32, i32
  }
  func.func @transform_6(%arg0: i32) -> (i32, i32, i32) {
    %c0_i32 = arith.constant 0 : i32
    %c0_i32_0 = arith.constant 0 : i32
    %c0_i32_1 = arith.constant 0 : i32
    return %arg0, %c0_i32, %c0_i32_0 : i32, i32, i32
  }
  func.func @transform_7(%arg0: i32) -> (i32, i32, i32) {
    %c0_i32 = arith.constant 0 : i32
    %c0_i32_0 = arith.constant 0 : i32
    %c0_i32_1 = arith.constant 0 : i32
    return %arg0, %c0_i32, %c0_i32_0 : i32, i32, i32
  }
  func.func @transform_8(%arg0: i32) -> (i32, i32, i32) {
    %c0_i32 = arith.constant 0 : i32
    %c0_i32_0 = arith.constant 0 : i32
    %c0_i32_1 = arith.constant 0 : i32
    return %arg0, %c0_i32, %c0_i32_0 : i32, i32, i32
  }
  func.func @transform_9(%arg0: i32) -> (i32, i32, i32) {
    %c0_i32 = arith.constant 0 : i32
    %c0_i32_0 = arith.constant 0 : i32
    %c0_i32_1 = arith.constant 0 : i32
    return %arg0, %c0_i32, %c0_i32_0 : i32, i32, i32
  }
}

</mosaic_0001>

<llo_original>
// kernel: tpu_custom_call.1
$region0: #{tpu_custom_call.1}
  #allocation0 [shape = 'u32[]', space=smem, size = 0x4, offset = 0x4, fixed_abs, tag = 'smem constant byte address 0x4 - core index']
  #allocation1 [shape = 'u32[72,128]{1,0:T(1,128)}', space=vmem, size = 0x9000, scoped, tag = 'internal scratch']
  %s0 = inlined_call_operand.vmem [shape: f32[16,16], index: 0, kind: input, shape index: {}]
  %s1 = inlined_call_operand.hbm [shape: f32[16,16], index: 1, kind: input, shape index: {}]
  %s2 = inlined_call_operand.vmem [shape: f32[16,8], index: 2, kind: input, shape index: {}]
  %s3 = inlined_call_operand.hbm [shape: f32[128,256], index: 3, kind: input, shape index: {}]
  %s4 = inlined_call_operand.hbm [shape: f32[128,256], index: 4, kind: input, shape index: {}]
  %s5 = inlined_call_operand.hbm [shape: f32[128,256], index: 5, kind: input, shape index: {}]
  %s6 = inlined_call_operand.hbm [shape: f32[2,16,128], index: 6, kind: input, shape index: {}]
  %s7 = inlined_call_operand.hbm [shape: f32[2,8,128], index: 7, kind: input, shape index: {}]
  %s8 = inlined_call_operand.hbm [shape: f32[2,16,256], index: 8, kind: input, shape index: {}]
  %s9 = inlined_call_operand.hbm [shape: f32[2,16,256], index: 9, kind: output, shape index: {}]
  %s10 = sld [smem:[#allocation0]]
  $region97: #{tpu_custom_call.1} parent=0
    _
  %s12 = ssub.s32 1, %s10
  %s13 = scalar_select 0, %s12, %s10
  $region1: #{tpu_custom_call.1} parent=0
    #allocation2 [shape = 'u8[8192]{0}', space=vmem, size = 0x2000, scoped, tag = 'input window, operand 1, single buffered']
    #allocation3 [shape = 's32[2]{0}', space=sflag, size = 0x8, scoped, tag = 'scoped memory for tpu_custom_call.1']
    #allocation4 [shape = 's32[2]{0}', space=sflag, size = 0x8, scoped, tag = 'scoped memory for tpu_custom_call.1']
    #allocation5 [shape = 'u8[131072]{0}', space=vmem, size = 0x20000, scoped, tag = 'input window, operand 3, single buffered']
    #allocation6 [shape = 's32[1]{0}', space=sflag, size = 0x4, scoped, tag = 'scoped memory for tpu_custom_call.1']
    #allocation7 [shape = 'u8[131072]{0}', space=vmem, size = 0x20000, scoped, tag = 'input window, operand 4, single buffered']
    #allocation8 [shape = 'u8[131072]{0}', space=vmem, size = 0x20000, scoped, tag = 'input window, operand 5, single buffered']
    #allocation9 [shape = 's32[1]{0}', space=sflag, size = 0x4, scoped, tag = 'scoped memory for tpu_custom_call.1']
    #allocation10 [shape = 'u8[16384]{0}', space=vmem, size = 0x4000, scoped, tag = 'input window, operand 6']
    #allocation11 [shape = 'u8[8192]{0}', space=vmem, size = 0x2000, scoped, tag = 'input window, operand 7']
    #allocation12 [shape = 'u8[32768]{0}', space=vmem, size = 0x8000, scoped, tag = 'input window, operand 8']
    #allocation13 [shape = 'u8[32768]{0}', space=vmem, size = 0x8000, scoped, tag = 'output window, operand 0']
    %14 = vsyncpa [#allocation3], 0
    %15 = vsyncpa [#allocation6], 0
    %16 = vsyncpa [#allocation9], 0
    %17 = vsyncpa [#allocation4], 0
    %s18 = scalar_lea.sflag [#allocation4], 1
    %19 = vsyncpa %s18, 0
    loop: start=0, step=1, limit=4
    $region2: #{tpu_custom_call.1} parent=1 // loop_pre_header
      _
    $region3: #{tpu_custom_call.1} parent=1 // loop_header
      %s21 = sphi 0, %s25
      %p22 = scmp.ge.s32.totalorder %s21, 4
      %s29 = sphi 0, %s29
      %s31 = sphi 0, %s29
      %s32 = sphi 0, %s31
      %s46 = sphi 0, %s32
      %s50 = sphi 0, %s50
      %s52 = sphi 0, %s50
      %s53 = sphi 0, %s52
      %s67 = sphi 0, %s53
      %s71 = sphi 0, %s71
      %s73 = sphi 0, %s71
      %s74 = sphi 0, %s73
      %s88 = sphi 0, %s74
      %s92 = sphi 0, %s92
      %s94 = sphi 0, %s92
      %s95 = sphi 0, %s94
      %s109 = sphi 0, %s95
      %s113 = sphi 0, %s113
      %s115 = sphi 0, %s113
      %s116 = sphi 0, %s115
      %s130 = sphi 0, %s116
      %s134 = sphi 0, %s134
      %s136 = sphi 0, %s134
      %s137 = sphi 0, %s136
      %s151 = sphi 0, %s137
      %s157 = sphi 0, %s159
      %s160 = sphi 0, %s157
      %s161 = sphi 0, %s160
      %s177 = sphi 0, %s161
      %s183 = sphi 0, %s185
      %s186 = sphi 0, %s183
      %s187 = sphi 0, %s186
      %s203 = sphi 0, %s187
      %s209 = sphi 0, %s211
      %s212 = sphi 0, %s209
      %s213 = sphi 0, %s212
      %s229 = sphi 0, %s213
      %s235 = sphi 0, %s237
      %s238 = sphi 0, %s235
      %s239 = sphi 0, %s238
      %s255 = sphi 0, %s239
    $region4: #{tpu_custom_call.1} parent=1 // loop_header_branch
      %24 = sbr.rel (%p22) target = $region8
    $region5: #{tpu_custom_call.1} parent=1 // loop_body
      %s26 = ssub.s32 %s21, 1
      %s27 = ssub.s32 %s21, 2
      %s28 = sadd.s32 %s21, 1
      %s30 = sadd.s32 %s29, 1
      %p33 = scmp.eq.s32.totalorder %s21, 1
      %p34 = scmp.ne.s32.totalorder %s29, %s31
      %p35 = scmp.eq.s32.totalorder %s21, 0
      %p36 = por %p34, %p35
      %p37 = scmp.ne.s32.totalorder %s29, %s31
      %p38 = scmp.eq.s32.totalorder %s26, 1
      %p39 = por %p37, %p38
      %p40 = scmp.ne.s32.totalorder %s31, %s32
      %p41 = scmp.eq.s32.totalorder %s26, 0
      %p42 = por %p40, %p41
      %p43 = scmp.ne.s32.totalorder %s31, %s32
      %p44 = scmp.eq.s32.totalorder %s27, 1
      %p45 = por %p43, %p44
      %p47 = scmp.ne.s32.totalorder %s32, %s46
      %p48 = scmp.eq.s32.totalorder %s27, 0
      %p49 = por %p47, %p48
      %s51 = sadd.s32 %s50, 1
      %p54 = scmp.eq.s32.totalorder %s21, 1
      %p55 = scmp.ne.s32.totalorder %s50, %s52
      %p56 = scmp.eq.s32.totalorder %s21, 0
      %p57 = por %p55, %p56
      %p58 = scmp.ne.s32.totalorder %s50, %s52
      %p59 = scmp.eq.s32.totalorder %s26, 1
      %p60 = por %p58, %p59
      %p61 = scmp.ne.s32.totalorder %s52, %s53
      %p62 = scmp.eq.s32.totalorder %s26, 0
      %p63 = por %p61, %p62
      %p64 = scmp.ne.s32.totalorder %s52, %s53
      %p65 = scmp.eq.s32.totalorder %s27, 1
      %p66 = por %p64, %p65
      %p68 = scmp.ne.s32.totalorder %s53, %s67
      %p69 = scmp.eq.s32.totalorder %s27, 0
      %p70 = por %p68, %p69
      %s72 = sadd.s32 %s71, 1
      %p75 = scmp.eq.s32.totalorder %s21, 1
      %p76 = scmp.ne.s32.totalorder %s71, %s73
      %p77 = scmp.eq.s32.totalorder %s21, 0
      %p78 = por %p76, %p77
      %p79 = scmp.ne.s32.totalorder %s71, %s73
      %p80 = scmp.eq.s32.totalorder %s26, 1
      %p81 = por %p79, %p80
      %p82 = scmp.ne.s32.totalorder %s73, %s74
      %p83 = scmp.eq.s32.totalorder %s26, 0
      %p84 = por %p82, %p83
      %p85 = scmp.ne.s32.totalorder %s73, %s74
      %p86 = scmp.eq.s32.totalorder %s27, 1
      %p87 = por %p85, %p86
      %p89 = scmp.ne.s32.totalorder %s74, %s88
      %p90 = scmp.eq.s32.totalorder %s27, 0
      %p91 = por %p89, %p90
      %s93 = sadd.s32 %s92, 1
      %p96 = scmp.eq.s32.totalorder %s21, 1
      %p97 = scmp.ne.s32.totalorder %s92, %s94
      %p98 = scmp.eq.s32.totalorder %s21, 0
      %p99 = por %p97, %p98
      %p100 = scmp.ne.s32.totalorder %s92, %s94
      %p101 = scmp.eq.s32.totalorder %s26, 1
      %p102 = por %p100, %p101
      %p103 = scmp.ne.s32.totalorder %s94, %s95
      %p104 = scmp.eq.s32.totalorder %s26, 0
      %p105 = por %p103, %p104
      %p106 = scmp.ne.s32.totalorder %s94, %s95
      %p107 = scmp.eq.s32.totalorder %s27, 1
      %p108 = por %p106, %p107
      %p110 = scmp.ne.s32.totalorder %s95, %s109
      %p111 = scmp.eq.s32.totalorder %s27, 0
      %p112 = por %p110, %p111
      %s114 = sadd.s32 %s113, 1
      %p117 = scmp.eq.s32.totalorder %s21, 1
      %p118 = scmp.ne.s32.totalorder %s113, %s115
      %p119 = scmp.eq.s32.totalorder %s21, 0
      %p120 = por %p118, %p119
      %p121 = scmp.ne.s32.totalorder %s113, %s115
      %p122 = scmp.eq.s32.totalorder %s26, 1
      %p123 = por %p121, %p122
      %p124 = scmp.ne.s32.totalorder %s115, %s116
      %p125 = scmp.eq.s32.totalorder %s26, 0
      %p126 = por %p124, %p125
      %p127 = scmp.ne.s32.totalorder %s115, %s116
      %p128 = scmp.eq.s32.totalorder %s27, 1
      %p129 = por %p127, %p128
      %p131 = scmp.ne.s32.totalorder %s116, %s130
      %p132 = scmp.eq.s32.totalorder %s27, 0
      %p133 = por %p131, %p132
      %s135 = sadd.s32 %s134, 1
      %p138 = scmp.eq.s32.totalorder %s21, 1
      %p139 = scmp.ne.s32.totalorder %s134, %s136
      %p140 = scmp.eq.s32.totalorder %s21, 0
      %p141 = por %p139, %p140
      %p142 = scmp.ne.s32.totalorder %s134, %s136
      %p143 = scmp.eq.s32.totalorder %s26, 1
      %p144 = por %p142, %p143
      %p145 = scmp.ne.s32.totalorder %s136, %s137
      %p146 = scmp.eq.s32.totalorder %s26, 0
      %p147 = por %p145, %p146
      %p148 = scmp.ne.s32.totalorder %s136, %s137
      %p149 = scmp.eq.s32.totalorder %s27, 1
      %p150 = por %p148, %p149
      %p152 = scmp.ne.s32.totalorder %s137, %s151
      %p153 = scmp.eq.s32.totalorder %s27, 0
      %p154 = por %p152, %p153
      %s155 = ssub.s32 %s21, %s28
      %p156 = scmp.eq.s32.totalorder %s155, 0
      %s158 = sadd.s32 %s157, 1
      %s159 = scalar_select %p156, %s157, %s158
      %p162 = pneg %p156
      %p163 = scmp.eq.s32.totalorder %s21, 1
      %p164 = por %p162, %p163
      %p165 = scmp.ne.s32.totalorder %s157, %s160
      %p166 = scmp.eq.s32.totalorder %s21, 0
      %p167 = por %p165, %p166
      %p168 = scmp.ne.s32.totalorder %s157, %s160
      %p169 = scmp.eq.s32.totalorder %s26, 1
      %p170 = por %p168, %p169
      %p171 = scmp.ne.s32.totalorder %s160, %s161
      %p172 = scmp.eq.s32.totalorder %s26, 0
      %p173 = por %p171, %p172
      %p174 = scmp.ne.s32.totalorder %s160, %s161
      %p175 = scmp.eq.s32.totalorder %s27, 1
      %p176 = por %p174, %p175
      %p178 = scmp.ne.s32.totalorder %s161, %s177
      %p179 = scmp.eq.s32.totalorder %s27, 0
      %p180 = por %p178, %p179
      %s181 = ssub.s32 %s21, %s28
      %p182 = scmp.eq.s32.totalorder %s181, 0
      %s184 = sadd.s32 %s183, 1
      %s185 = scalar_select %p182, %s183, %s184
      %p188 = pneg %p182
      %p189 = scmp.eq.s32.totalorder %s21, 1
      %p190 = por %p188, %p189
      %p191 = scmp.ne.s32.totalorder %s183, %s186
      %p192 = scmp.eq.s32.totalorder %s21, 0
      %p193 = por %p191, %p192
      %p194 = scmp.ne.s32.totalorder %s183, %s186
      %p195 = scmp.eq.s32.totalorder %s26, 1
      %p196 = por %p194, %p195
      %p197 = scmp.ne.s32.totalorder %s186, %s187
      %p198 = scmp.eq.s32.totalorder %s26, 0
      %p199 = por %p197, %p198
      %p200 = scmp.ne.s32.totalorder %s186, %s187
      %p201 = scmp.eq.s32.totalorder %s27, 1
      %p202 = por %p200, %p201
      %p204 = scmp.ne.s32.totalorder %s187, %s203
      %p205 = scmp.eq.s32.totalorder %s27, 0
      %p206 = por %p204, %p205
      %s207 = ssub.s32 %s21, %s28
      %p208 = scmp.eq.s32.totalorder %s207, 0
      %s210 = sadd.s32 %s209, 1
      %s211 = scalar_select %p208, %s209, %s210
      %p214 = pneg %p208
      %p215 = scmp.eq.s32.totalorder %s21, 1
      %p216 = por %p214, %p215
      %p217 = scmp.ne.s32.totalorder %s209, %s212
      %p218 = scmp.eq.s32.totalorder %s21, 0
      %p219 = por %p217, %p218
      %p220 = scmp.ne.s32.totalorder %s209, %s212
      %p221 = scmp.eq.s32.totalorder %s26, 1
      %p222 = por %p220, %p221
      %p223 = scmp.ne.s32.totalorder %s212, %s213
      %p224 = scmp.eq.s32.totalorder %s26, 0
      %p225 = por %p223, %p224
      %p226 = scmp.ne.s32.totalorder %s212, %s213
      %p227 = scmp.eq.s32.totalorder %s27, 1
      %p228 = por %p226, %p227
      %p230 = scmp.ne.s32.totalorder %s213, %s229
      %p231 = scmp.eq.s32.totalorder %s27, 0
      %p232 = por %p230, %p231
      %s233 = ssub.s32 %s21, %s28
      %p234 = scmp.eq.s32.totalorder %s233, 0
      %s236 = sadd.s32 %s235, 1
      %s237 = scalar_select %p234, %s235, %s236
      %p240 = pneg %p234
      %p241 = scmp.eq.s32.totalorder %s21, 1
      %p242 = por %p240, %p241
      %p243 = scmp.ne.s32.totalorder %s235, %s238
      %p244 = scmp.eq.s32.totalorder %s21, 0
      %p245 = por %p243, %p244
      %p246 = scmp.ne.s32.totalorder %s235, %s238
      %p247 = scmp.eq.s32.totalorder %s26, 1
      %p248 = por %p246, %p247
      %p249 = scmp.ne.s32.totalorder %s238, %s239
      %p250 = scmp.eq.s32.totalorder %s26, 0
      %p251 = por %p249, %p250
      %p252 = scmp.ne.s32.totalorder %s238, %s239
      %p253 = scmp.eq.s32.totalorder %s27, 1
      %p254 = por %p252, %p253
      %p256 = scmp.ne.s32.totalorder %s239, %s255
      %p257 = scmp.eq.s32.totalorder %s27, 0
      %p258 = por %p256, %p257
      %p259 = scmp.le.s32.totalorder 1, %s21
      %p260 = scmp.lt.s32.totalorder %s21, 3
      %p261 = pnand %p259, %p260
      %p262 = pneg %p261
      // Predicated region
      $region9: #{tpu_custom_call.1} parent=5 // pred_check
        _
      $region10: #{tpu_custom_call.1} parent=5 // pred_check_branch
        %264 = sbr.rel (%p261) target = $region12
      $region11: #{tpu_custom_call.1} parent=5 // pred_region
        %s265 = ssub.s32 %s21, 1
        // Predicated region
        $region13: #{tpu_custom_call.1} parent=11 // pred_check
          %p266 = pneg %p42
        $region14: #{tpu_custom_call.1} parent=11 // pred_check_branch
          %268 = sbr.rel (%p266) target = $region16
        $region15: #{tpu_custom_call.1} parent=11 // pred_region
          _
        $region16: #{tpu_custom_call.1} parent=11 // pred_fallthru
          _
        // Predicated region
        $region17: #{tpu_custom_call.1} parent=11 // pred_check
          %p269 = pneg %p63
        $region18: #{tpu_custom_call.1} parent=11 // pred_check_branch
          %271 = sbr.rel (%p269) target = $region20
        $region19: #{tpu_custom_call.1} parent=11 // pred_region
          %273 = vsyncadd [#allocation3], 0
          %s274 = sshll.u32 %s1, 4
          %s275 = int_to_ptr.hbm [resolvable:$true] %s274
          %s276 = sshll.u32 [#allocation2], 4
          %s277 = int_to_ptr.vmem [resolvable:$true] %s276
          %282 = dma.hbm_to_vmem [thread:$0]  %s275, 256, %s277, [#allocation3], 128, 128, 8
        $region20: #{tpu_custom_call.1} parent=11 // pred_fallthru
          _
        // Predicated region
        $region21: #{tpu_custom_call.1} parent=11 // pred_check
          %p283 = pneg %p84
        $region22: #{tpu_custom_call.1} parent=11 // pred_check_branch
          %285 = sbr.rel (%p283) target = $region24
        $region23: #{tpu_custom_call.1} parent=11 // pred_region
          _
        $region24: #{tpu_custom_call.1} parent=11 // pred_fallthru
          _
        // Predicated region
        $region25: #{tpu_custom_call.1} parent=11 // pred_check
          %p286 = pneg %p105
        $region26: #{tpu_custom_call.1} parent=11 // pred_check_branch
          %288 = sbr.rel (%p286) target = $region28
        $region27: #{tpu_custom_call.1} parent=11 // pred_region
          %290 = vsyncadd [#allocation6], 0
          %s291 = sshll.u32 %s3, 4
          %s292 = int_to_ptr.hbm [resolvable:$true] %s291
          %s293 = sshll.u32 [#allocation5], 4
          %s294 = int_to_ptr.vmem [resolvable:$true] %s293
          %299 = dma.hbm_to_vmem [thread:$0]  %s292, 4096, %s294, [#allocation6], 256, 256, 16
        $region28: #{tpu_custom_call.1} parent=11 // pred_fallthru
          _
        // Predicated region
        $region29: #{tpu_custom_call.1} parent=11 // pred_check
          %p300 = pneg %p126
        $region30: #{tpu_custom_call.1} parent=11 // pred_check_branch
          %302 = sbr.rel (%p300) target = $region32
        $region31: #{tpu_custom_call.1} parent=11 // pred_region
          %304 = vsyncadd [#allocation6], 0
          %s305 = sshll.u32 %s4, 4
          %s306 = int_to_ptr.hbm [resolvable:$true] %s305
          %s307 = sshll.u32 [#allocation7], 4
          %s308 = int_to_ptr.vmem [resolvable:$true] %s307
          %313 = dma.hbm_to_vmem [thread:$0]  %s306, 4096, %s308, [#allocation6], 256, 256, 16
        $region32: #{tpu_custom_call.1} parent=11 // pred_fallthru
          _
        // Predicated region
        $region33: #{tpu_custom_call.1} parent=11 // pred_check
          %p314 = pneg %p147
        $region34: #{tpu_custom_call.1} parent=11 // pred_check_branch
          %316 = sbr.rel (%p314) target = $region36
        $region35: #{tpu_custom_call.1} parent=11 // pred_region
          %318 = vsyncadd [#allocation9], 0
          %s319 = sshll.u32 %s5, 4
          %s320 = int_to_ptr.hbm [resolvable:$true] %s319
          %s321 = sshll.u32 [#allocation8], 4
          %s322 = int_to_ptr.vmem [resolvable:$true] %s321
          %327 = dma.hbm_to_vmem [thread:$0]  %s320, 4096, %s322, [#allocation9], 256, 256, 16
        $region36: #{tpu_custom_call.1} parent=11 // pred_fallthru
          _
      $region12: #{tpu_custom_call.1} parent=5 // pred_fallthru
        _
      %p328 = scmp.lt.s32.totalorder %s21, 2
      // Predicated region
      $region37: #{tpu_custom_call.1} parent=5 // pred_check
        %p329 = pneg %p328
      $region38: #{tpu_custom_call.1} parent=5 // pred_check_branch
        %331 = sbr.rel (%p329) target = $region40
      $region39: #{tpu_custom_call.1} parent=5 // pred_region
        // Predicated region
        $region41: #{tpu_custom_call.1} parent=39 // pred_check
          %p332 = pneg %p167
        $region42: #{tpu_custom_call.1} parent=39 // pred_check_branch
          %334 = sbr.rel (%p332) target = $region44
        $region43: #{tpu_custom_call.1} parent=39 // pred_region
          %s335 = sand.u32 %s21, 1
          %s336 = scalar_lea.sflag [#allocation3], %s335
          %s337 = sand.u32 %s157, 1
          %s338 = smul.addr %s337, 16
          %s339 = scalar_lea.vmem [#allocation10], %s338
          %341 = vsyncadd %s336, 0
          %s342 = smul.addr %s21, 2
          %s343 = smul.addr %s342, 8
          %s344 = scalar_lea.hbm %s6, %s343
          %s345 = sshll.u32 %s344, 4
          %s346 = int_to_ptr.hbm [resolvable:$true] %s345
          %s347 = sshll.u32 %s339, 4
          %s348 = int_to_ptr.vmem [resolvable:$true] %s347
          %353 = dma.hbm_to_vmem [thread:$0]  %s346, 256, %s348, %s336, 128, 128, 8
        $region44: #{tpu_custom_call.1} parent=39 // pred_fallthru
          _
        // Predicated region
        $region45: #{tpu_custom_call.1} parent=39 // pred_check
          %p354 = pneg %p193
        $region46: #{tpu_custom_call.1} parent=39 // pred_check_branch
          %356 = sbr.rel (%p354) target = $region48
        $region47: #{tpu_custom_call.1} parent=39 // pred_region
          %s357 = sand.u32 %s21, 1
          %s358 = scalar_lea.sflag [#allocation3], %s357
          %s359 = sand.u32 %s183, 1
          %s360 = smul.addr %s359, 8
          %s361 = scalar_lea.vmem [#allocation11], %s360
          %363 = vsyncadd %s358, 0
          %s364 = smul.addr %s21, 8
          %s365 = scalar_lea.hbm %s7, %s364
          %s367 = sshll.u32 %s365, 4
          %s368 = int_to_ptr.hbm [resolvable:$true] %s367
          %s369 = sshll.u32 %s361, 4
          %s370 = int_to_ptr.vmem [resolvable:$true] %s369
          %372 = dma.hbm_to_vmem [thread:$0]  %s368, 128, %s370, %s358
        $region48: #{tpu_custom_call.1} parent=39 // pred_fallthru
          _
        // Predicated region
        $region49: #{tpu_custom_call.1} parent=39 // pred_check
          %p373 = pneg %p219
        $region50: #{tpu_custom_call.1} parent=39 // pred_check_branch
          %375 = sbr.rel (%p373) target = $region52
        $region51: #{tpu_custom_call.1} parent=39 // pred_region
          %s376 = sand.u32 %s21, 1
          %s377 = scalar_lea.sflag [#allocation3], %s376
          %s378 = sand.u32 %s209, 1
          %s379 = smul.addr %s378, 32
          %s380 = scalar_lea.vmem [#allocation12], %s379
          %382 = vsyncadd %s377, 0
          %s383 = smul.addr %s21, 4
          %s384 = smul.addr %s383, 8
          %s385 = scalar_lea.hbm %s8, %s384
          %s386 = sshll.u32 %s385, 4
          %s387 = int_to_ptr.hbm [resolvable:$true] %s386
          %s388 = sshll.u32 %s380, 4
          %s389 = int_to_ptr.vmem [resolvable:$true] %s388
          %394 = dma.hbm_to_vmem [thread:$0]  %s387, 512, %s389, %s377, 256, 256, 16
        $region52: #{tpu_custom_call.1} parent=39 // pred_fallthru
          _
      $region40: #{tpu_custom_call.1} parent=5 // pred_fallthru
        _
      %p395 = scmp.le.s32.totalorder 1, %s21
      %p396 = scmp.lt.s32.totalorder %s21, 3
      %p397 = pnand %p395, %p396
      %p398 = pneg %p397
      // Predicated region
      $region53: #{tpu_custom_call.1} parent=5 // pred_check
        _
      $region54: #{tpu_custom_call.1} parent=5 // pred_check_branch
        %400 = sbr.rel (%p397) target = $region56
      $region55: #{tpu_custom_call.1} parent=5 // pred_region
        %s401 = ssub.s32 %s21, 1
        // Predicated region
        $region57: #{tpu_custom_call.1} parent=55 // pred_check
          %p402 = pneg %p63
        $region58: #{tpu_custom_call.1} parent=55 // pred_check_branch
          %404 = sbr.rel (%p402) target = $region60
        $region59: #{tpu_custom_call.1} parent=55 // pred_region
          %406 = dma.done [#allocation3], 256
        $region60: #{tpu_custom_call.1} parent=55 // pred_fallthru
          _
        // Predicated region
        $region61: #{tpu_custom_call.1} parent=55 // pred_check
          %p407 = pneg %p105
        $region62: #{tpu_custom_call.1} parent=55 // pred_check_branch
          %409 = sbr.rel (%p407) target = $region64
        $region63: #{tpu_custom_call.1} parent=55 // pred_region
          %411 = dma.done [#allocation6], 4096
        $region64: #{tpu_custom_call.1} parent=55 // pred_fallthru
          _
        // Predicated region
        $region65: #{tpu_custom_call.1} parent=55 // pred_check
          %p412 = pneg %p126
        $region66: #{tpu_custom_call.1} parent=55 // pred_check_branch
          %414 = sbr.rel (%p412) target = $region68
        $region67: #{tpu_custom_call.1} parent=55 // pred_region
          %416 = dma.done [#allocation6], 4096
        $region68: #{tpu_custom_call.1} parent=55 // pred_fallthru
          _
        // Predicated region
        $region69: #{tpu_custom_call.1} parent=55 // pred_check
          %p417 = pneg %p147
        $region70: #{tpu_custom_call.1} parent=55 // pred_check_branch
          %419 = sbr.rel (%p417) target = $region72
        $region71: #{tpu_custom_call.1} parent=55 // pred_region
          %421 = dma.done [#allocation9], 4096
        $region72: #{tpu_custom_call.1} parent=55 // pred_fallthru
          _
        %s422 = sand.u32 %s26, 1
        %s423 = scalar_lea.sflag [#allocation3], %s422
        %s424 = sand.u32 %s160, 1
        %s425 = smul.addr %s424, 16
        %s426 = scalar_lea.vmem [#allocation10], %s425
        // Predicated region
        $region73: #{tpu_custom_call.1} parent=55 // pred_check
          %p427 = pneg %p173
        $region74: #{tpu_custom_call.1} parent=55 // pred_check_branch
          %429 = sbr.rel (%p427) target = $region76
        $region75: #{tpu_custom_call.1} parent=55 // pred_region
          %431 = dma.done %s423, 256
        $region76: #{tpu_custom_call.1} parent=55 // pred_fallthru
          _
        %s432 = sand.u32 %s26, 1
        %s433 = scalar_lea.sflag [#allocation3], %s432
        %s434 = sand.u32 %s186, 1
        %s435 = smul.addr %s434, 8
        %s436 = scalar_lea.vmem [#allocation11], %s435
        // Predicated region
        $region77: #{tpu_custom_call.1} parent=55 // pred_check
          %p437 = pneg %p199
        $region78: #{tpu_custom_call.1} parent=55 // pred_check_branch
          %439 = sbr.rel (%p437) target = $region80
        $region79: #{tpu_custom_call.1} parent=55 // pred_region
          %441 = dma.done %s433, 128
        $region80: #{tpu_custom_call.1} parent=55 // pred_fallthru
          _
        %s442 = sand.u32 %s26, 1
        %s443 = scalar_lea.sflag [#allocation3], %s442
        %s444 = sand.u32 %s212, 1
        %s445 = smul.addr %s444, 32
        %s446 = scalar_lea.vmem [#allocation12], %s445
        // Predicated region
        $region81: #{tpu_custom_call.1} parent=55 // pred_check
          %p447 = pneg %p225
        $region82: #{tpu_custom_call.1} parent=55 // pred_check_branch
          %449 = sbr.rel (%p447) target = $region84
        $region83: #{tpu_custom_call.1} parent=55 // pred_region
          %451 = dma.done %s443, 512
        $region84: #{tpu_custom_call.1} parent=55 // pred_fallthru
          _
        %p452 = pneg %p42
        %p453 = pneg %p39
        %p454 = pneg %p63
        %p455 = pneg %p60
        %p456 = pneg %p84
        %p457 = pneg %p81
        %p458 = pneg %p105
        %p459 = pneg %p102
        %p460 = pneg %p126
        %p461 = pneg %p123
        %p462 = pneg %p147
        %p463 = pneg %p144
        %s464 = sand.u32 %s26, 1
        %s465 = scalar_lea.sflag [#allocation3], %s464
        %s466 = sand.u32 %s160, 1
        %s467 = smul.addr %s466, 16
        %s468 = scalar_lea.vmem [#allocation10], %s467
        %p469 = pneg %p173
        %p470 = pneg %p170
        %s471 = sand.u32 %s26, 1
        %s472 = scalar_lea.sflag [#allocation3], %s471
        %s473 = sand.u32 %s186, 1
        %s474 = smul.addr %s473, 8
        %s475 = scalar_lea.vmem [#allocation11], %s474
        %p476 = pneg %p199
        %p477 = pneg %p196
        %s478 = sand.u32 %s26, 1
        %s479 = scalar_lea.sflag [#allocation3], %s478
        %s480 = sand.u32 %s212, 1
        %s481 = smul.addr %s480, 32
        %s482 = scalar_lea.vmem [#allocation12], %s481
        %p483 = pneg %p225
        %p484 = pneg %p222
        %p485 = pneg %p251
        %p486 = pneg %p248
        %s487 = sand.u32 %s238, 1
        %s488 = scalar_lea.sflag [#allocation4], %s487
        %s489 = sand.u32 %s238, 1
        %s490 = smul.addr %s489, 32
        %s491 = scalar_lea.vmem [#allocation13], %s490
        %v492 = vld [vmem:[%s0] sm:$0xff]
        %v493 = vld [vmem:[%s0 + $0x8] sm:$0xff]
        %v494 = vld [vmem:[#allocation2] sm:$0xff]
        %v495 = vld [vmem:[#allocation2 + $0x8] sm:$0xff]
        %v496 = vld [vmem:[%s2] sm:$0xff]
        %v497 = vld [vmem:[%s2 + $0x8] sm:$0xff]
        %v498 = vld [vmem:[#allocation5] sm:$0xff]
        %v499 = vld [vmem:[#allocation5 + $0x8] sm:$0xff]
        %v500 = vld [vmem:[#allocation5 + $0x10] sm:$0xff]
        %v501 = vld [vmem:[#allocation5 + $0x18] sm:$0xff]
        %v502 = vld [vmem:[#allocation5 + $0x20] sm:$0xff]
        %v503 = vld [vmem:[#allocation5 + $0x28] sm:$0xff]
        %v504 = vld [vmem:[#allocation5 + $0x30] sm:$0xff]
        %v505 = vld [vmem:[#allocation5 + $0x38] sm:$0xff]
        %v506 = vld [vmem:[#allocation5 + $0x40] sm:$0xff]
        %v507 = vld [vmem:[#allocation5 + $0x48] sm:$0xff]
        %v508 = vld [vmem:[#allocation5 + $0x50] sm:$0xff]
        %v509 = vld [vmem:[#allocation5 + $0x58] sm:$0xff]
        %v510 = vld [vmem:[#allocation5 + $0x60] sm:$0xff]
        %v511 = vld [vmem:[#allocation5 + $0x68] sm:$0xff]
        %v512 = vld [vmem:[#allocation5 + $0x70] sm:$0xff]
        %v513 = vld [vmem:[#allocation5 + $0x78] sm:$0xff]
        %v514 = vld [vmem:[#allocation5 + $0x80] sm:$0xff]
        %v515 = vld [vmem:[#allocation5 + $0x88] sm:$0xff]
        %v516 = vld [vmem:[#allocation5 + $0x90] sm:$0xff]
        %v517 = vld [vmem:[#allocation5 + $0x98] sm:$0xff]
        %v518 = vld [vmem:[#allocation5 + $0xa0] sm:$0xff]
        %v519 = vld [vmem:[#allocation5 + $0xa8] sm:$0xff]
        %v520 = vld [vmem:[#allocation5 + $0xb0] sm:$0xff]
        %v521 = vld [vmem:[#allocation5 + $0xb8] sm:$0xff]
        %v522 = vld [vmem:[#allocation5 + $0xc0] sm:$0xff]
        %v523 = vld [vmem:[#allocation5 + $0xc8] sm:$0xff]
        %v524 = vld [vmem:[#allocation5 + $0xd0] sm:$0xff]
        %v525 = vld [vmem:[#allocation5 + $0xd8] sm:$0xff]
        %v526 = vld [vmem:[#allocation5 + $0xe0] sm:$0xff]
        %v527 = vld [vmem:[#allocation5 + $0xe8] sm:$0xff]
        %v528 = vld [vmem:[#allocation5 + $0xf0] sm:$0xff]
        %v529 = vld [vmem:[#allocation5 + $0xf8] sm:$0xff]
        %v530 = vld [vmem:[#allocation7] sm:$0xff]
        %v531 = vld [vmem:[#allocation7 + $0x8] sm:$0xff]
        %v532 = vld [vmem:[#allocation7 + $0x10] sm:$0xff]
        %v533 = vld [vmem:[#allocation7 + $0x18] sm:$0xff]
        %v534 = vld [vmem:[#allocation7 + $0x20] sm:$0xff]
        %v535 = vld [vmem:[#allocation7 + $0x28] sm:$0xff]
        %v536 = vld [vmem:[#allocation7 + $0x30] sm:$0xff]
        %v537 = vld [vmem:[#allocation7 + $0x38] sm:$0xff]
        %v538 = vld [vmem:[#allocation7 + $0x40] sm:$0xff]
        %v539 = vld [vmem:[#allocation7 + $0x48] sm:$0xff]
        %v540 = vld [vmem:[#allocation7 + $0x50] sm:$0xff]
        %v541 = vld [vmem:[#allocation7 + $0x58] sm:$0xff]
        %v542 = vld [vmem:[#allocation7 + $0x60] sm:$0xff]
        %v543 = vld [vmem:[#allocation7 + $0x68] sm:$0xff]
        %v544 = vld [vmem:[#allocation7 + $0x70] sm:$0xff]
        %v545 = vld [vmem:[#allocation7 + $0x78] sm:$0xff]
        %v546 = vld [vmem:[#allocation7 + $0x80] sm:$0xff]
        %v547 = vld [vmem:[#allocation7 + $0x88] sm:$0xff]
        %v548 = vld [vmem:[#allocation7 + $0x90] sm:$0xff]
        %v549 = vld [vmem:[#allocation7 + $0x98] sm:$0xff]
        %v550 = vld [vmem:[#allocation7 + $0xa0] sm:$0xff]
        %v551 = vld [vmem:[#allocation7 + $0xa8] sm:$0xff]
        %v552 = vld [vmem:[#allocation7 + $0xb0] sm:$0xff]
        %v553 = vld [vmem:[#allocation7 + $0xb8] sm:$0xff]
        %v554 = vld [vmem:[#allocation7 + $0xc0] sm:$0xff]
        %v555 = vld [vmem:[#allocation7 + $0xc8] sm:$0xff]
        %v556 = vld [vmem:[#allocation7 + $0xd0] sm:$0xff]
        %v557 = vld [vmem:[#allocation7 + $0xd8] sm:$0xff]
        %v558 = vld [vmem:[#allocation7 + $0xe0] sm:$0xff]
        %v559 = vld [vmem:[#allocation7 + $0xe8] sm:$0xff]
        %v560 = vld [vmem:[#allocation7 + $0xf0] sm:$0xff]
        %v561 = vld [vmem:[#allocation7 + $0xf8] sm:$0xff]
        %v562 = vld [vmem:[#allocation8] sm:$0xff]
        %v563 = vld [vmem:[#allocation8 + $0x8] sm:$0xff]
        %v564 = vld [vmem:[#allocation8 + $0x10] sm:$0xff]
        %v565 = vld [vmem:[#allocation8 + $0x18] sm:$0xff]
        %v566 = vld [vmem:[#allocation8 + $0x20] sm:$0xff]
        %v567 = vld [vmem:[#allocation8 + $0x28] sm:$0xff]
        %v568 = vld [vmem:[#allocation8 + $0x30] sm:$0xff]
        %v569 = vld [vmem:[#allocation8 + $0x38] sm:$0xff]
        %v570 = vld [vmem:[#allocation8 + $0x40] sm:$0xff]
        %v571 = vld [vmem:[#allocation8 + $0x48] sm:$0xff]
        %v572 = vld [vmem:[#allocation8 + $0x50] sm:$0xff]
        %v573 = vld [vmem:[#allocation8 + $0x58] sm:$0xff]
        %v574 = vld [vmem:[#allocation8 + $0x60] sm:$0xff]
        %v575 = vld [vmem:[#allocation8 + $0x68] sm:$0xff]
        %v576 = vld [vmem:[#allocation8 + $0x70] sm:$0xff]
        %v577 = vld [vmem:[#allocation8 + $0x78] sm:$0xff]
        %v578 = vld [vmem:[#allocation8 + $0x80] sm:$0xff]
        %v579 = vld [vmem:[#allocation8 + $0x88] sm:$0xff]
        %v580 = vld [vmem:[#allocation8 + $0x90] sm:$0xff]
        %v581 = vld [vmem:[#allocation8 + $0x98] sm:$0xff]
        %v582 = vld [vmem:[#allocation8 + $0xa0] sm:$0xff]
        %v583 = vld [vmem:[#allocation8 + $0xa8] sm:$0xff]
        %v584 = vld [vmem:[#allocation8 + $0xb0] sm:$0xff]
        %v585 = vld [vmem:[#allocation8 + $0xb8] sm:$0xff]
        %v586 = vld [vmem:[#allocation8 + $0xc0] sm:$0xff]
        %v587 = vld [vmem:[#allocation8 + $0xc8] sm:$0xff]
        %v588 = vld [vmem:[#allocation8 + $0xd0] sm:$0xff]
        %v589 = vld [vmem:[#allocation8 + $0xd8] sm:$0xff]
        %v590 = vld [vmem:[#allocation8 + $0xe0] sm:$0xff]
        %v591 = vld [vmem:[#allocation8 + $0xe8] sm:$0xff]
        %v592 = vld [vmem:[#allocation8 + $0xf0] sm:$0xff]
        %v593 = vld [vmem:[#allocation8 + $0xf8] sm:$0xff]
        %v594 = vld [vmem:[%s426] sm:$0xff]
        %v595 = vld [vmem:[%s426 + $0x8] sm:$0xff]
        %v596 = vld [vmem:[%s436] sm:$0xff]
        %v597 = vld [vmem:[%s446] sm:$0xff]
        %v598 = vld [vmem:[%s446 + $0x8] sm:$0xff]
        %v599 = vld [vmem:[%s446 + $0x10] sm:$0xff]
        %v600 = vld [vmem:[%s446 + $0x18] sm:$0xff]
        %vm601 = vcmask 130048
        %v603 = vsel %vm601, %v492, 0
        %v606 = vsel %vm601, %v493, 0
        %608 = vmatpush.msra.mxu0 0.0
        %609 = vmatpush.msra.mxu0 0.0
        %610 = vmatpush.msra.mxu0 0.0
        %611 = vmatpush.msra.mxu0 0.0
        %612 = vmatpush.msra.mxu0 0.0
        %613 = vmatpush.msra.mxu0 0.0
        %614 = vmatpush.msra.mxu0 0.0
        %615 = vmatpush.msra.mxu0 0.0
        %616 = vmatpush.msra.mxu0 0.0
        %617 = vmatpush.msra.mxu0 0.0
        %618 = vmatpush.msra.mxu0 0.0
        %619 = vmatpush.msra.mxu0 0.0
        %620 = vmatpush.msra.mxu0 0.0
        %621 = vmatpush.msra.mxu0 0.0
        %622 = vmatpush.msra.mxu0 %v595
        %623 = vmatpush.msra.mxu0 %v594
        %624 = vmatmul.f32.gmra.mxu0 %v603
        %v625 = vpop.f32.mrf.mxu0
        %v626 = vadd.f32 0.0, %v625
        %627 = vmatmul.f32.gmra.mxu0 %v606
        %v628 = vpop.f32.mrf.mxu0
        %v629 = vadd.f32 0.0, %v628
        %630 = vdwg.mxu0
        %v632 = vsel %vm601, %v494, 0
        %v635 = vsel %vm601, %v495, 0
        %637 = vmatpush.msra.mxu0 0.0
        %638 = vmatpush.msra.mxu0 0.0
        %639 = vmatpush.msra.mxu0 0.0
        %640 = vmatpush.msra.mxu0 0.0
        %641 = vmatpush.msra.mxu0 0.0
        %642 = vmatpush.msra.mxu0 0.0
        %643 = vmatpush.msra.mxu0 0.0
        %644 = vmatpush.msra.mxu0 0.0
        %645 = vmatpush.msra.mxu0 0.0
        %646 = vmatpush.msra.mxu0 0.0
        %647 = vmatpush.msra.mxu0 0.0
        %648 = vmatpush.msra.mxu0 0.0
        %649 = vmatpush.msra.mxu0 0.0
        %650 = vmatpush.msra.mxu0 0.0
        %651 = vmatpush.msra.mxu0 %v595
        %652 = vmatpush.msra.mxu0 %v594
        %653 = vmatmul.f32.gmra.mxu0 %v632
        %v654 = vpop.f32.mrf.mxu0
        %v655 = vadd.f32 0.0, %v654
        %656 = vmatmul.f32.gmra.mxu0 %v635
        %v657 = vpop.f32.mrf.mxu0
        %v658 = vadd.f32 0.0, %v657
        %659 = vdwg.mxu0
        %vm660 = vcmask 64512
        %v662 = vsel %vm660, %v496, 0
        %v665 = vsel %vm660, %v497, 0
        %667 = vmatpush.msra.mxu0 0.0
        %668 = vmatpush.msra.mxu0 0.0
        %669 = vmatpush.msra.mxu0 0.0
        %670 = vmatpush.msra.mxu0 0.0
        %671 = vmatpush.msra.mxu0 0.0
        %672 = vmatpush.msra.mxu0 0.0
        %673 = vmatpush.msra.mxu0 0.0
        %674 = vmatpush.msra.mxu0 0.0
        %675 = vmatpush.msra.mxu0 0.0
        %676 = vmatpush.msra.mxu0 0.0
        %677 = vmatpush.msra.mxu0 0.0
        %678 = vmatpush.msra.mxu0 0.0
        %679 = vmatpush.msra.mxu0 0.0
        %680 = vmatpush.msra.mxu0 0.0
        %681 = vmatpush.msra.mxu0 0.0
        %682 = vmatpush.msra.mxu0 %v596
        %683 = vmatmul.f32.gmra.mxu0 %v662
        %v684 = vpop.f32.mrf.mxu0
        %v685 = vadd.f32 0.0, %v684
        %686 = vmatmul.f32.gmra.mxu0 %v665
        %v687 = vpop.f32.mrf.mxu0
        %v688 = vadd.f32 0.0, %v687
        %689 = vdwg.mxu0
        %690 = vmatpush.msra.mxu0 %v528
        %691 = vmatpush.msra.mxu0 %v526
        %692 = vmatpush.msra.mxu0 %v524
        %693 = vmatpush.msra.mxu0 %v522
        %694 = vmatpush.msra.mxu0 %v520
        %695 = vmatpush.msra.mxu0 %v518
        %696 = vmatpush.msra.mxu0 %v516
        %697 = vmatpush.msra.mxu0 %v514
        %698 = vmatpush.msra.mxu0 %v512
        %699 = vmatpush.msra.mxu0 %v510
        %700 = vmatpush.msra.mxu0 %v508
        %701 = vmatpush.msra.mxu0 %v506
        %702 = vmatpush.msra.mxu0 %v504
        %703 = vmatpush.msra.mxu0 %v502
        %704 = vmatpush.msra.mxu0 %v500
        %705 = vmatpush.msra.mxu0 %v498
        %706 = vmatmul.f32.gmra.mxu0 %v626
        %v707 = vpop.f32.mrf.mxu0
        %v708 = vadd.f32 0.0, %v707
        %709 = vmatmul.f32.gmra.mxu0 %v629
        %v710 = vpop.f32.mrf.mxu0
        %v711 = vadd.f32 0.0, %v710
        %712 = vdwg.mxu0
        %713 = vmatpush.msra.mxu0 %v529
        %714 = vmatpush.msra.mxu0 %v527
        %715 = vmatpush.msra.mxu0 %v525
        %716 = vmatpush.msra.mxu0 %v523
        %717 = vmatpush.msra.mxu0 %v521
        %718 = vmatpush.msra.mxu0 %v519
        %719 = vmatpush.msra.mxu0 %v517
        %720 = vmatpush.msra.mxu0 %v515
        %721 = vmatpush.msra.mxu0 %v513
        %722 = vmatpush.msra.mxu0 %v511
        %723 = vmatpush.msra.mxu0 %v509
        %724 = vmatpush.msra.mxu0 %v507
        %725 = vmatpush.msra.mxu0 %v505
        %726 = vmatpush.msra.mxu0 %v503
        %727 = vmatpush.msra.mxu0 %v501
        %728 = vmatpush.msra.mxu0 %v499
        %729 = vmatmul.f32.gmra.mxu0 %v626
        %v730 = vpop.f32.mrf.mxu0
        %v731 = vadd.f32 0.0, %v730
        %732 = vmatmul.f32.gmra.mxu0 %v629
        %v733 = vpop.f32.mrf.mxu0
        %v734 = vadd.f32 0.0, %v733
        %735 = vdwg.mxu0
        %v736 = vmax.f32 %v708, 0.0
        %v737 = vmax.f32 %v731, 0.0
        %v738 = vmax.f32 %v711, 0.0
        %v739 = vmax.f32 %v734, 0.0
        %740 = vmatpush.msra.mxu0 %v592
        %741 = vmatpush.msra.mxu0 %v590
        %742 = vmatpush.msra.mxu0 %v588
        %743 = vmatpush.msra.mxu0 %v586
        %744 = vmatpush.msra.mxu0 %v584
        %745 = vmatpush.msra.mxu0 %v582
        %746 = vmatpush.msra.mxu0 %v580
        %747 = vmatpush.msra.mxu0 %v578
        %748 = vmatpush.msra.mxu0 %v576
        %749 = vmatpush.msra.mxu0 %v574
        %750 = vmatpush.msra.mxu0 %v572
        %751 = vmatpush.msra.mxu0 %v570
        %752 = vmatpush.msra.mxu0 %v568
        %753 = vmatpush.msra.mxu0 %v566
        %754 = vmatpush.msra.mxu0 %v564
        %755 = vmatpush.msra.mxu0 %v562
        %756 = vmatmul.f32.gmra.mxu0 %v685
        %v757 = vpop.f32.mrf.mxu0
        %v758 = vadd.f32 0.0, %v757
        %759 = vmatmul.f32.gmra.mxu0 %v688
        %v760 = vpop.f32.mrf.mxu0
        %v761 = vadd.f32 0.0, %v760
        %762 = vdwg.mxu0
        %763 = vmatpush.msra.mxu0 %v593
        %764 = vmatpush.msra.mxu0 %v591
        %765 = vmatpush.msra.mxu0 %v589
        %766 = vmatpush.msra.mxu0 %v587
        %767 = vmatpush.msra.mxu0 %v585
        %768 = vmatpush.msra.mxu0 %v583
        %769 = vmatpush.msra.mxu0 %v581
        %770 = vmatpush.msra.mxu0 %v579
        %771 = vmatpush.msra.mxu0 %v577
        %772 = vmatpush.msra.mxu0 %v575
        %773 = vmatpush.msra.mxu0 %v573
        %774 = vmatpush.msra.mxu0 %v571
        %775 = vmatpush.msra.mxu0 %v569
        %776 = vmatpush.msra.mxu0 %v567
        %777 = vmatpush.msra.mxu0 %v565
        %778 = vmatpush.msra.mxu0 %v563
        %779 = vmatmul.f32.gmra.mxu0 %v685
        %v780 = vpop.f32.mrf.mxu0
        %v781 = vadd.f32 0.0, %v780
        %782 = vmatmul.f32.gmra.mxu0 %v688
        %v783 = vpop.f32.mrf.mxu0
        %v784 = vadd.f32 0.0, %v783
        %785 = vdwg.mxu0
        %786 = vmatpush.msra.mxu0 %v560
        %787 = vmatpush.msra.mxu0 %v558
        %788 = vmatpush.msra.mxu0 %v556
        %789 = vmatpush.msra.mxu0 %v554
        %790 = vmatpush.msra.mxu0 %v552
        %791 = vmatpush.msra.mxu0 %v550
        %792 = vmatpush.msra.mxu0 %v548
        %793 = vmatpush.msra.mxu0 %v546
        %794 = vmatpush.msra.mxu0 %v544
        %795 = vmatpush.msra.mxu0 %v542
        %796 = vmatpush.msra.mxu0 %v540
        %797 = vmatpush.msra.mxu0 %v538
        %798 = vmatpush.msra.mxu0 %v536
        %799 = vmatpush.msra.mxu0 %v534
        %800 = vmatpush.msra.mxu0 %v532
        %801 = vmatpush.msra.mxu0 %v530
        %802 = vmatmul.f32.gmra.mxu0 %v655
        %v803 = vpop.f32.mrf.mxu0
        %v804 = vadd.f32 %v758, %v803
        %805 = vmatmul.f32.gmra.mxu0 %v658
        %v806 = vpop.f32.mrf.mxu0
        %v807 = vadd.f32 %v761, %v806
        %808 = vdwg.mxu0
        %809 = vmatpush.msra.mxu0 %v561
        %810 = vmatpush.msra.mxu0 %v559
        %811 = vmatpush.msra.mxu0 %v557
        %812 = vmatpush.msra.mxu0 %v555
        %813 = vmatpush.msra.mxu0 %v553
        %814 = vmatpush.msra.mxu0 %v551
        %815 = vmatpush.msra.mxu0 %v549
        %816 = vmatpush.msra.mxu0 %v547
        %817 = vmatpush.msra.mxu0 %v545
        %818 = vmatpush.msra.mxu0 %v543
        %819 = vmatpush.msra.mxu0 %v541
        %820 = vmatpush.msra.mxu0 %v539
        %821 = vmatpush.msra.mxu0 %v537
        %822 = vmatpush.msra.mxu0 %v535
        %823 = vmatpush.msra.mxu0 %v533
        %824 = vmatpush.msra.mxu0 %v531
        %825 = vmatmul.f32.gmra.mxu0 %v655
        %v826 = vpop.f32.mrf.mxu0
        %v827 = vadd.f32 %v781, %v826
        %828 = vmatmul.f32.gmra.mxu0 %v658
        %v829 = vpop.f32.mrf.mxu0
        %v830 = vadd.f32 %v784, %v829
        %831 = vdwg.mxu0
        %v832 = vxor.u32 %v804, 2147483648
        %v833 = vxor.u32 %v827, 2147483648
        %v834 = vxor.u32 %v807, 2147483648
        %v835 = vxor.u32 %v830, 2147483648
        %v836 = vmul.f32 %v832, 1.442695
        %v837 = vpow.pop %v836
        %v838 = vmul.f32 %v833, 1.442695
        %v839 = vpow.pop %v838
        %v840 = vmul.f32 %v834, 1.442695
        %v841 = vpow.pop %v840
        %v842 = vmul.f32 %v835, 1.442695
        %v843 = vpow.pop %v842
        %v844 = vadd.f32 %v837, 1.0
        %v845 = vadd.f32 %v839, 1.0
        %v846 = vadd.f32 %v841, 1.0
        %v847 = vadd.f32 %v843, 1.0
        %v848 = vrcp.pop %v844
        %v849 = vmul.f32 %v844, %v848
        %v850 = vsub.f32 1.0, %v849
        %v851 = vmul.f32 %v848, %v850
        %v852 = vadd.f32 %v848, %v851
        %vm853 = vweird.f32 %v844
        %vm854 = vweird.f32 %v848
        %vm855 = vmor %vm853, %vm854
        %v856 = vsel %vm855, %v848, %v852
        %v857 = vand.u32 2147483647, %v844
        %vm858 = vcmp.eq.f32.partialorder %v857, 8.507059e+37
        %v859 = vand.u32 %v844, 2147483648
        %v860 = vor.u32 1.1754944e-38, %v859
        %v861 = vsel %vm858, %v860, %v856
        %v862 = vmul.f32 1.0, %v861
        %v863 = vrcp.pop %v845
        %v864 = vmul.f32 %v845, %v863
        %v865 = vsub.f32 1.0, %v864
        %v866 = vmul.f32 %v863, %v865
        %v867 = vadd.f32 %v863, %v866
        %vm868 = vweird.f32 %v845
        %vm869 = vweird.f32 %v863
        %vm870 = vmor %vm868, %vm869
        %v871 = vsel %vm870, %v863, %v867
        %v872 = vand.u32 2147483647, %v845
        %vm873 = vcmp.eq.f32.partialorder %v872, 8.507059e+37
        %v874 = vand.u32 %v845, 2147483648
        %v875 = vor.u32 1.1754944e-38, %v874
        %v876 = vsel %vm873, %v875, %v871
        %v877 = vmul.f32 1.0, %v876
        %v878 = vrcp.pop %v846
        %v879 = vmul.f32 %v846, %v878
        %v880 = vsub.f32 1.0, %v879
        %v881 = vmul.f32 %v878, %v880
        %v882 = vadd.f32 %v878, %v881
        %vm883 = vweird.f32 %v846
        %vm884 = vweird.f32 %v878
        %vm885 = vmor %vm883, %vm884
        %v886 = vsel %vm885, %v878, %v882
        %v887 = vand.u32 2147483647, %v846
        %vm888 = vcmp.eq.f32.partialorder %v887, 8.507059e+37
        %v889 = vand.u32 %v846, 2147483648
        %v890 = vor.u32 1.1754944e-38, %v889
        %v891 = vsel %vm888, %v890, %v886
        %v892 = vmul.f32 1.0, %v891
        %v893 = vrcp.pop %v847
        %v894 = vmul.f32 %v847, %v893
        %v895 = vsub.f32 1.0, %v894
        %v896 = vmul.f32 %v893, %v895
        %v897 = vadd.f32 %v893, %v896
        %vm898 = vweird.f32 %v847
        %vm899 = vweird.f32 %v893
        %vm900 = vmor %vm898, %vm899
        %v901 = vsel %vm900, %v893, %v897
        %v902 = vand.u32 2147483647, %v847
        %vm903 = vcmp.eq.f32.partialorder %v902, 8.507059e+37
        %v904 = vand.u32 %v847, 2147483648
        %v905 = vor.u32 1.1754944e-38, %v904
        %v906 = vsel %vm903, %v905, %v901
        %v907 = vmul.f32 1.0, %v906
        %v908 = vadd.f32 %v736, %v862
        %v909 = vadd.f32 %v737, %v877
        %v910 = vadd.f32 %v738, %v892
        %v911 = vadd.f32 %v739, %v907
        %v912 = vmul.f32 %v908, 0.5
        %v913 = vmul.f32 %v909, 0.5
        %v914 = vmul.f32 %v910, 0.5
        %v915 = vmul.f32 %v911, 0.5
        %v916 = vmax.f32 %v912, 0.0
        %v917 = vmax.f32 %v913, 0.0
        %v918 = vmax.f32 %v914, 0.0
        %v919 = vmax.f32 %v915, 0.0
        %v920 = vmul.f32 %v916, 0.9
        %v921 = vmul.f32 %v917, 0.9
        %v922 = vmul.f32 %v918, 0.9
        %v923 = vmul.f32 %v919, 0.9
        %v924 = vmul.f32 %v597, 0.1
        %v925 = vmul.f32 %v598, 0.1
        %v926 = vmul.f32 %v599, 0.1
        %v927 = vmul.f32 %v600, 0.1
        %v928 = vadd.f32 %v920, %v924
        %v929 = vadd.f32 %v921, %v925
        %v930 = vadd.f32 %v922, %v926
        %v931 = vadd.f32 %v923, %v927
        %v932 = vmax.f32 %v928, 0.0
        %v933 = vmax.f32 %v929, 0.0
        %v934 = vmax.f32 %v930, 0.0
        %v935 = vmax.f32 %v931, 0.0
        %936 = vst [vmem:[%s491] sm:$0xff] %v932
        %937 = vst [vmem:[%s491 + $0x8] sm:$0xff] %v933
        %938 = vst [vmem:[%s491 + $0x10] sm:$0xff] %v934
        %939 = vst [vmem:[%s491 + $0x18] sm:$0xff] %v935
        %s940 = sand.u32 %s238, 1
        %s941 = scalar_lea.sflag [#allocation4], %s940
        %s942 = sand.u32 %s238, 1
        %s943 = smul.addr %s942, 32
        %s944 = scalar_lea.vmem [#allocation13], %s943
        // Predicated region
        $region85: #{tpu_custom_call.1} parent=55 // pred_check
          %p945 = pneg %p248
        $region86: #{tpu_custom_call.1} parent=55 // pred_check_branch
          %947 = sbr.rel (%p945) target = $region88
        $region87: #{tpu_custom_call.1} parent=55 // pred_region
          %949 = vsyncadd %s941, 0
          %s950 = smul.addr %s26, 4
          %s951 = smul.addr %s950, 8
          %s952 = scalar_lea.hbm %s9, %s951
          %s953 = sshll.u32 %s944, 4
          %s954 = int_to_ptr.vmem [resolvable:$true] %s953
          %s955 = sshll.u32 %s952, 4
          %s956 = int_to_ptr.hbm [resolvable:$true] %s955
          %961 = dma.vmem_to_hbm [thread:$0]  %s954, 512, %s956, %s941, 256, 256, 16
        $region88: #{tpu_custom_call.1} parent=55 // pred_fallthru
          _
      $region56: #{tpu_custom_call.1} parent=5 // pred_fallthru
        _
      %p962 = scmp.le.s32.totalorder 2, %s21
      // Predicated region
      $region89: #{tpu_custom_call.1} parent=5 // pred_check
        %p963 = pneg %p962
      $region90: #{tpu_custom_call.1} parent=5 // pred_check_branch
        %965 = sbr.rel (%p963) target = $region92
      $region91: #{tpu_custom_call.1} parent=5 // pred_region
        %s966 = ssub.s32 %s21, 2
        // Predicated region
        $region93: #{tpu_custom_call.1} parent=91 // pred_check
          %p967 = pneg %p254
        $region94: #{tpu_custom_call.1} parent=91 // pred_check_branch
          %969 = sbr.rel (%p967) target = $region96
        $region95: #{tpu_custom_call.1} parent=91 // pred_region
          %s970 = sand.u32 %s239, 1
          %s971 = scalar_lea.sflag [#allocation4], %s970
          %s972 = sand.u32 %s239, 1
          %s973 = smul.addr %s972, 32
          %s974 = scalar_lea.vmem [#allocation13], %s973
          %976 = dma.done %s971, 512
        $region96: #{tpu_custom_call.1} parent=91 // pred_fallthru
          _
      $region92: #{tpu_custom_call.1} parent=5 // pred_fallthru
        _
    $region6: #{tpu_custom_call.1} parent=1 // loop_footer
      %s25 = sadd.s32 1, %s21
    $region7: #{tpu_custom_call.1} parent=1 // loop_footer_branch
      %20 = sbr.rel target = $region3
    $region8: #{tpu_custom_call.1} parent=1 // loop_exit
      _
    %977 = vsyncpa [#allocation3], 1
    %s978 = scalar_lea.sflag [#allocation3], 1
    %979 = vsyncpa %s978, 1
    %980 = vsyncpa [#allocation6], 1
    %981 = vsyncpa [#allocation9], 1
    %982 = vsyncpa [#allocation4], 1
    %s983 = scalar_lea.sflag [#allocation4], 1
    %984 = vsyncpa %s983, 1

</llo_original>
